<compile_context>
chip_gen: v5e
topology: v5e:2x2
jax: 0.10.0
libtpu: 0.0.40
codegen_flags: <defaults>
</compile_context>

<pallas_src>
import jax
import jax.numpy as jnp
from jax.experimental import pallas as pl
from jax.experimental.pallas import tpu as pltpu


# ----------------------------------------------------------------- helpers -------------

def _round_up(v, m):
    return (v + m - 1) // m * m


# ----------------------------------------------------------------- Pallas kernel -------

def _sin_linear_kernel(x_ref, w_ref, b_ref, o_ref, acc_ref):
    # x_ref: (tm, tk)  w_ref: (tk, tn)  b_ref: (1, tn)  o_ref: (tm, tn)  acc_ref: (tm, tn) f32
    k = pl.program_id(2)

    @pl.when(k == 0)
    def _init():
        acc_ref[...] = jnp.zeros_like(acc_ref)

    # bf16 operands -> full-rate MXU on v5e/v6e/v7x; f32 accumulation.
    acc_ref[...] += jnp.dot(
        x_ref[...].astype(jnp.bfloat16),
        w_ref[...].astype(jnp.bfloat16),
        preferred_element_type=jnp.float32,
    )

    @pl.when(k == pl.num_programs(2) - 1)
    def _finalize():
        y = acc_ref[...] + b_ref[...].astype(jnp.float32)   # bias add in f32 (VPU)
        o_ref[...] = jnp.sin(y).astype(o_ref.dtype)          # sin in f32, downcast at store


# -------------------------------------------------------------------- wrapper ----------

def linear_with_sin(x, w, b, *, row_tile=256, out_tile=256, k_tile=512):
    """sin(x @ w + b).

    x: (..., IN) ; w: (IN, OUT)  (== PyTorch weight.T) ; b: (OUT,) or (1, OUT).
    """
    in_features, out_features = w.shape
    assert x.shape[-1] == in_features
    lead = x.shape[:-1]

    x2 = x.reshape(-1, in_features)
    m = x2.shape[0]
    b2 = b.reshape(1, out_features)

    # ---- row (M) tiling: pad rows instead of asserting divisibility.
    tm = _round_up(min(row_tile, _round_up(max(m, 1), 8)), 8)
    m_pad = _round_up(m, tm)
    if m_pad != m:
        x2 = jnp.pad(x2, ((0, m_pad - m), (0, 0)))

    # ---- OUT (N) tiling: lane-dense tiles, multiples of 128.
    n_pad = _round_up(out_features, 128)
    tn = _round_up(min(out_tile, n_pad), 128)
    n_pad = _round_up(n_pad, tn)
    if n_pad != out_features:
        w = jnp.pad(w, ((0, 0), (0, n_pad - out_features)))
        b2 = jnp.pad(b2, ((0, 0), (0, n_pad - out_features)))

    # ---- K tiling: only worth it for large IN; otherwise keep full-K blocks.
    if in_features > k_tile and in_features % k_tile == 0:
        tk = k_tile
    else:
        tk = in_features
    k_steps = in_features // tk

    grid = (m_pad // tm, n_pad // tn, k_steps)

    # VMEM budget: double-buffered x / w / b / out tiles + f32 accumulator, with headroom.
    xi = jnp.dtype(x2.dtype).itemsize
    wi = jnp.dtype(w.dtype).itemsize
    oi = jnp.dtype(x.dtype).itemsize
    vmem_bytes = (2 * tm * tk * xi + 2 * tk * tn * wi + 2 * tn * wi
                  + 2 * tm * tn * oi + tm * tn * 4)
    vmem_limit = min(128 * 1024 * 1024, int(vmem_bytes * 1.5) + (4 << 20))

    out = pl.pallas_call(
        _sin_linear_kernel,
        out_shape=jax.ShapeDtypeStruct((m_pad, n_pad), x.dtype),
        grid_spec=pltpu.PrefetchScalarGridSpec(
            num_scalar_prefetch=0,
            grid=grid,
            in_specs=[
                pl.BlockSpec((tm, tk), lambda i, j, k: (i, k)),   # x row tile
                pl.BlockSpec((tk, tn), lambda i, j, k: (k, j)),   # weight tile
                pl.BlockSpec((1, tn), lambda i, j, k: (0, j)),    # bias tile
            ],
            out_specs=pl.BlockSpec((tm, tn), lambda i, j, k: (i, j)),
            scratch_shapes=[pltpu.VMEM((tm, tn), jnp.float32)],
        ),
        compiler_params=pltpu.CompilerParams(
            dimension_semantics=("parallel", "parallel", "arbitrary"),
            vmem_limit_bytes=vmem_limit,
        ),
    )(x2, w, b2)

    return out[:m, :out_features].reshape(*lead, out_features)


# --------------------------------------------------------------- plain-JAX reference ---

def _reference(x, w, b):
    y = jnp.dot(x, w, preferred_element_type=jnp.float32) + b.reshape(-1)
    return jnp.sin(y).astype(x.dtype)


# ------------------------------------------------------------------------ main ---------

if __name__ == "__main__":
    IN_FEATURES = 32
    OUT_FEATURES = 128

    key = jax.random.PRNGKey(0)
    kx, kw, kb, kx2 = jax.random.split(key, 4)

    # PyTorch-style Linear params: weight (out, in), bias (out,). Kernel takes weight.T.
    w_torch = 0.1 * jax.random.normal(kw, (OUT_FEATURES, IN_FEATURES), jnp.float32)
    b = 0.1 * jax.random.normal(kb, (OUT_FEATURES,), jnp.float32)
    w = w_torch.T                                  # (IN, OUT)

    # Case 1: (batch=2, seq=8, hidden=32) -> 128
    x = jax.random.normal(kx, (2, 8, IN_FEATURES), jnp.float32)
    out = jax.block_until_ready(linear_with_sin(x, w, b))
    ref = _reference(x, w, b)
    assert out.shape == (2, 8, OUT_FEATURES)
    assert bool(jnp.all(jnp.isfinite(out)))
    assert bool(jnp.allclose(out, ref, atol=2e-2, rtol=2e-2))

    # Case 2: row count not a multiple of 8 -> exercises the padding path.
    x_odd = jax.random.normal(kx2, (3, 5, IN_FEATURES), jnp.float32)
    out_odd = jax.block_until_ready(linear_with_sin(x_odd, w, b))
    ref_odd = _reference(x_odd, w, b)
    assert out_odd.shape == (3, 5, OUT_FEATURES)
    assert bool(jnp.allclose(out_odd, ref_odd, atol=2e-2, rtol=2e-2))

    print("KERNEL_OK")
</pallas_src>

<mosaic_0001>
module attributes {stable_mosaic.version = 11 : i64} {
  func.func @_sin_linear_kernel(%arg0: i32, %arg1: i32, %arg2: i32, %arg3: memref<16x32xf32, #tpu.memory_space<vmem>>, %arg4: memref<32x128xf32, #tpu.memory_space<vmem>>, %arg5: memref<1x128xf32, #tpu.memory_space<vmem>>, %arg6: memref<16x128xf32, #tpu.memory_space<vmem>>, %arg7: memref<16x128xf32, #tpu.memory_space<vmem>>) attributes {dimension_semantics = [#tpu.dimension_semantics<parallel>, #tpu.dimension_semantics<parallel>, #tpu.dimension_semantics<arbitrary>], iteration_bounds = array<i64: 1, 1, 1>, scalar_prefetch = 0 : i64, scratch_operands = 1 : i64, tpu.core_type = #tpu.core_type<tc>, window_params = [{transform_indices = @transform_0, window_bounds = array<i64: 16, 32>}, {transform_indices = @transform_1, window_bounds = array<i64: 32, 128>}, {transform_indices = @transform_2, window_bounds = array<i64: 1, 128>}, {transform_indices = @transform_3, window_bounds = array<i64: 16, 128>}]} {
    %c0_i32 = arith.constant 0 : i32
    %0 = arith.cmpi eq, %arg2, %c0_i32 : i32
    %1 = arith.extui %0 : i1 to i32
    %c0_i32_0 = arith.constant 0 : i32
    %2 = arith.cmpi ne, %1, %c0_i32_0 : i32
    scf.if %2 {
      %cst_10 = arith.constant 0.000000e+00 : f32
      %14 = vector.broadcast %cst_10 : f32 to vector<16x128xf32>
      %c0_11 = arith.constant 0 : index
      %c0_12 = arith.constant 0 : index
      %15 = vector.load %arg7[%c0_11, %c0_12] : memref<16x128xf32, #tpu.memory_space<vmem>>, vector<16x128xf32>
      tpu.vector_store %arg7[%c0_11, %c0_12], %14 {strides = array<i32>} : memref<16x128xf32, #tpu.memory_space<vmem>>, vector<16x128xf32>,
    } else {
    }
    %c0 = arith.constant 0 : index
    %c0_1 = arith.constant 0 : index
    %3 = vector.load %arg7[%c0, %c0_1] : memref<16x128xf32, #tpu.memory_space<vmem>>, vector<16x128xf32>
    %c0_2 = arith.constant 0 : index
    %c0_3 = arith.constant 0 : index
    %4 = vector.load %arg3[%c0_2, %c0_3] : memref<16x32xf32, #tpu.memory_space<vmem>>, vector<16x32xf32>
    %5 = arith.truncf %4 : vector<16x32xf32> to vector<16x32xbf16>
    %c0_4 = arith.constant 0 : index
    %c0_5 = arith.constant 0 : index
    %6 = vector.load %arg4[%c0_4, %c0_5] : memref<32x128xf32, #tpu.memory_space<vmem>>, vector<32x128xf32>
    %7 = arith.truncf %6 : vector<32x128xf32> to vector<32x128xbf16>
    %cst = arith.constant dense<0.000000e+00> : vector<16x128xf32>
    %8 = tpu.matmul %5, %7, %cst {dimension_numbers = #tpu.dot_dimension_numbers<[1], [0], [0], [1], [0, 0, 1, 1], [], []>} : vector<16x32xbf16>, vector<32x128xbf16>, vector<16x128xf32> -> vector<16x128xf32>
    %9 = arith.addf %3, %8 : vector<16x128xf32>
    %c0_6 = arith.constant 0 : index
    %c0_7 = arith.constant 0 : index
    %10 = vector.load %arg7[%c0_6, %c0_7] : memref<16x128xf32, #tpu.memory_space<vmem>>, vector<16x128xf32>
    tpu.vector_store %arg7[%c0_6, %c0_7], %9 {strides = array<i32>} : memref<16x128xf32, #tpu.memory_space<vmem>>, vector<16x128xf32>,
    %c0_i32_8 = arith.constant 0 : i32
    %11 = arith.cmpi eq, %arg2, %c0_i32_8 : i32
    %12 = arith.extui %11 : i1 to i32
    %c0_i32_9 = arith.constant 0 : i32
    %13 = arith.cmpi ne, %12, %c0_i32_9 : i32
    scf.if %13 {
      %c0_10 = arith.constant 0 : index
      %c0_11 = arith.constant 0 : index
      %14 = vector.load %arg7[%c0_10, %c0_11] : memref<16x128xf32, #tpu.memory_space<vmem>>, vector<16x128xf32>
      %c0_12 = arith.constant 0 : index
      %c0_13 = arith.constant 0 : index
      %15 = vector.load %arg5[%c0_12, %c0_13] : memref<1x128xf32, #tpu.memory_space<vmem>>, vector<1x128xf32>
      %16 = vector.broadcast %15 : vector<1x128xf32> to vector<16x128xf32>
      %17 = arith.addf %14, %16 : vector<16x128xf32>
      %18 = math.sin %17 : vector<16x128xf32>
      %c0_14 = arith.constant 0 : index
      %c0_15 = arith.constant 0 : index
      %19 = vector.load %arg6[%c0_14, %c0_15] : memref<16x128xf32, #tpu.memory_space<vmem>>, vector<16x128xf32>
      tpu.vector_store %arg6[%c0_14, %c0_15], %18 {strides = array<i32>} : memref<16x128xf32, #tpu.memory_space<vmem>>, vector<16x128xf32>,
    } else {
    }
    return
  }
  func.func @transform_0(%arg0: i32, %arg1: i32, %arg2: i32) -> (i32, i32) {
    %c0_i32 = arith.constant 0 : i32
    return %arg0, %arg2 : i32, i32
  }
  func.func @transform_1(%arg0: i32, %arg1: i32, %arg2: i32) -> (i32, i32) {
    %c0_i32 = arith.constant 0 : i32
    return %arg2, %arg1 : i32, i32
  }
  func.func @transform_2(%arg0: i32, %arg1: i32, %arg2: i32) -> (i32, i32) {
    %c0_i32 = arith.constant 0 : i32
    %c0_i32_0 = arith.constant 0 : i32
    return %c0_i32, %arg1 : i32, i32
  }
  func.func @transform_3(%arg0: i32, %arg1: i32, %arg2: i32) -> (i32, i32) {
    %c0_i32 = arith.constant 0 : i32
    return %arg0, %arg1 : i32, i32
  }
}

</mosaic_0001>

<llo_original>
// kernel: tpu_custom_call.1
$region0: #{tpu_custom_call.1}
  #allocation0 [shape = 'u32[]', space=smem, size = 0x4, offset = 0x4, fixed_abs, tag = 'smem constant byte address 0x4 - core index']
  #allocation1 [shape = 'u32[72,128]{1,0:T(1,128)}', space=vmem, size = 0x9000, scoped, tag = 'internal scratch']
  #allocation2 [shape = 'f32[16,128]{1,0:T(8,128)}', space=vmem, size = 0x2000, scoped, tag = 'scratch operand']
  %s0 = inlined_call_operand.hbm [shape: f32[16,32], index: 0, kind: input, shape index: {}]
  %s1 = inlined_call_operand.hbm [shape: f32[32,128], index: 1, kind: input, shape index: {}]
  %s2 = inlined_call_operand.vmem [shape: f32[1,128], index: 2, kind: input, shape index: {}]
  %s3 = inlined_call_operand.hbm [shape: f32[16,128], index: 3, kind: output, shape index: {}]
  %s4 = sld [smem:[#allocation0]]
  $region38: #{tpu_custom_call.1} parent=0
    _
  %s6 = ssub.s32 1, %s4
  %s7 = scalar_select 0, %s6, %s4
  $region1: #{tpu_custom_call.1} parent=0
    #allocation3 [shape = 'u8[8192]{0}', space=vmem, size = 0x2000, scoped, tag = 'input window, operand 0, single buffered']
    #allocation4 [shape = 's32[1]{0}', space=sflag, size = 0x4, scoped, tag = 'scoped memory for tpu_custom_call.1']
    #allocation5 [shape = 's32[1]{0}', space=sflag, size = 0x4, scoped, tag = 'scoped memory for tpu_custom_call.1']
    #allocation6 [shape = 'u8[16384]{0}', space=vmem, size = 0x4000, scoped, tag = 'input window, operand 1, single buffered']
    #allocation7 [shape = 's32[1]{0}', space=sflag, size = 0x4, scoped, tag = 'scoped memory for tpu_custom_call.1']
    #allocation8 [shape = 'u8[8192]{0}', space=vmem, size = 0x2000, scoped, tag = 'output window, operand 0, single buffered']
    %8 = vsyncpa [#allocation4], 0
    %9 = vsyncpa [#allocation7], 0
    %10 = vsyncpa [#allocation5], 0
    // Predicated region
    $region2: #{tpu_custom_call.1} parent=1 // pred_check
      _
    $region3: #{tpu_custom_call.1} parent=1 // pred_check_branch
      %12 = sbr.rel (0) target = $region5
    $region4: #{tpu_custom_call.1} parent=1 // pred_region
      %14 = vsyncadd [#allocation4], 0
      %s15 = sshll.u32 %s0, 4
      %s16 = int_to_ptr.hbm [resolvable:$true] %s15
      %s17 = sshll.u32 [#allocation3], 4
      %s18 = int_to_ptr.vmem [resolvable:$true] %s17
      %23 = dma.hbm_to_vmem [thread:$0]  %s16, 256, %s18, [#allocation4], 128, 128, 8
    $region5: #{tpu_custom_call.1} parent=1 // pred_fallthru
      _
    // Predicated region
    $region6: #{tpu_custom_call.1} parent=1 // pred_check
      _
    $region7: #{tpu_custom_call.1} parent=1 // pred_check_branch
      %25 = sbr.rel (0) target = $region9
    $region8: #{tpu_custom_call.1} parent=1 // pred_region
      %27 = vsyncadd [#allocation7], 0
      %s28 = sshll.u32 %s1, 4
      %s29 = int_to_ptr.hbm [resolvable:$true] %s28
      %s30 = sshll.u32 [#allocation6], 4
      %s31 = int_to_ptr.vmem [resolvable:$true] %s30
      %36 = dma.hbm_to_vmem [thread:$0]  %s29, 512, %s31, [#allocation7], 128, 128, 8
    $region9: #{tpu_custom_call.1} parent=1 // pred_fallthru
      _
    // Predicated region
    $region10: #{tpu_custom_call.1} parent=1 // pred_check
      _
    $region11: #{tpu_custom_call.1} parent=1 // pred_check_branch
      %38 = sbr.rel (0) target = $region13
    $region12: #{tpu_custom_call.1} parent=1 // pred_region
      _
    $region13: #{tpu_custom_call.1} parent=1 // pred_fallthru
      _
    // Predicated region
    $region14: #{tpu_custom_call.1} parent=1 // pred_check
      _
    $region15: #{tpu_custom_call.1} parent=1 // pred_check_branch
      %40 = sbr.rel (0) target = $region17
    $region16: #{tpu_custom_call.1} parent=1 // pred_region
      %42 = dma.done [#allocation4], 256
    $region17: #{tpu_custom_call.1} parent=1 // pred_fallthru
      _
    // Predicated region
    $region18: #{tpu_custom_call.1} parent=1 // pred_check
      _
    $region19: #{tpu_custom_call.1} parent=1 // pred_check_branch
      %44 = sbr.rel (0) target = $region21
    $region20: #{tpu_custom_call.1} parent=1 // pred_region
      %46 = dma.done [#allocation7], 512
    $region21: #{tpu_custom_call.1} parent=1 // pred_fallthru
      _
    %p48 = scmp.eq.s32.totalorder 0, 0
    // Predicated region
    $region22: #{tpu_custom_call.1} parent=1 // pred_check
      %p49 = pneg %p48
    $region23: #{tpu_custom_call.1} parent=1 // pred_check_branch
      %51 = sbr.rel (%p49) target = $region25
    $region24: #{tpu_custom_call.1} parent=1 // pred_region
      %52 = vst [vmem:[#allocation2] sm:$0xff] 0.0
      %53 = vst [vmem:[#allocation2 + $0x8] sm:$0xff] 0.0
    $region25: #{tpu_custom_call.1} parent=1 // pred_fallthru
      _
    %v54 = vld [vmem:[#allocation2] sm:$0xff]
    %v55 = vld [vmem:[#allocation2 + $0x8] sm:$0xff]
    %v56 = vld [vmem:[#allocation3] sm:$0xff]
    %v57 = vld [vmem:[#allocation3 + $0x8] sm:$0xff]
    %v58 = vpack.c.bf16 %v57, %v56
    %v59 = vld [vmem:[#allocation6] sm:$0xff]
    %v60 = vld [vmem:[#allocation6 + $0x8] sm:$0xff]
    %v61 = vld [vmem:[#allocation6 + $0x10] sm:$0xff]
    %v62 = vld [vmem:[#allocation6 + $0x18] sm:$0xff]
    %v63 = vpack.c.bf16 %v60, %v59
    %v64 = vpack.c.bf16 %v62, %v61
    %vm65 = vcmask 261120
    %v67 = vsel %vm65, %v58, 0
    %69 = vmatpush.bf16.msra.mxu0 0
    %70 = vmatpush.bf16.msra.mxu0 0
    %71 = vmatpush.bf16.msra.mxu0 0
    %72 = vmatpush.bf16.msra.mxu0 0
    %73 = vmatpush.bf16.msra.mxu0 0
    %74 = vmatpush.bf16.msra.mxu0 0
    %75 = vmatpush.bf16.msra.mxu0 %v64
    %76 = vmatpush.bf16.msra.mxu0 %v63
    %77 = vmatmul.bf16.gmra.mxu0 %v67
    %v78 = vpop.f32.mrf.mxu0
    %v79 = vadd.f32 0.0, %v78
    %v80 = vpop.f32.mrf.mxu0
    %v81 = vadd.f32 0.0, %v80
    %82 = vdwg.mxu0
    %v83 = vadd.f32 %v54, %v79
    %v84 = vadd.f32 %v55, %v81
    %85 = vst [vmem:[#allocation2] sm:$0xff] %v83
    %86 = vst [vmem:[#allocation2 + $0x8] sm:$0xff] %v84
    // Predicated region
    $region26: #{tpu_custom_call.1} parent=1 // pred_check
      %p87 = pneg %p48
    $region27: #{tpu_custom_call.1} parent=1 // pred_check_branch
      %89 = sbr.rel (%p87) target = $region29
    $region28: #{tpu_custom_call.1} parent=1 // pred_region
      %v90 = vld [vmem:[#allocation2] sm:$0xff]
      %v91 = vld [vmem:[#allocation2 + $0x8] sm:$0xff]
      %v92 = vld [vmem:[%s2] sm:$0x1]
      %v94 = vperm.slane %v92, 0
      %v96 = vadd.f32 %v90, %v94
      %v97 = vadd.f32 %v91, %v94
      %v98 = vand.u32 2147483647, %v96
      %vm99 = vcmp.le.f32.partialorder %v98, 0.7853982
      %vm100 = vcmp.lt.s32.totalorder %v96, 0
      %v101 = vand.u32 %v96, 2139095040
      %v102 = vshrl.u32 %v101, 23
      %v103 = vsub.s32 %v102, 127
      %v104 = vand.u32 2147483647, %v96
      %v105 = vand.u32 %v104, 8388607
      %v106 = vor.u32 %v105, 8388608
      %v107 = vsub.s32 0, %v106
      %v108 = vadd.s32 %v103, 1
      %vm109 = vcmp.gt.s32.totalorder %v108, 0
      %v110 = vsel %vm109, %v108, 0
      %v111 = vshrl.u32 %v110, 5
      %v112 = vand.u32 %v110, 31
      %v113 = vsub.s32 32, %v112
      %v114 = vshrl.u32 683565275, %v113
      %v115 = vshll.u32 683565275, %v112
      %v116 = vshrl.u32 2475754826, %v113
      %v117 = vor.u32 %v115, %v116
      %v118 = vshll.u32 2475754826, %v112
      %v119 = vshrl.u32 2131351028, %v113
      %v120 = vor.u32 %v118, %v119
      %v121 = vshll.u32 2131351028, %v112
      %v122 = vshrl.u32 2102212464, %v113
      %v123 = vor.u32 %v121, %v122
      %v124 = vshll.u32 2102212464, %v112
      %v125 = vshrl.u32 920167782, %v113
      %v126 = vor.u32 %v124, %v125
      %v127 = vshll.u32 920167782, %v112
      %v128 = vshrl.u32 1326507024, %v113
      %v129 = vor.u32 %v127, %v128
      %vm130 = vcmp.lt.s32.totalorder %v111, 1
      %vm131 = vcmp.lt.s32.totalorder %v111, 2
      %vm132 = vcmp.lt.s32.totalorder %v111, 3
      %vm133 = vcmp.lt.s32.totalorder %v111, 4
      %v134 = vsel %vm130, %v114, %v117
      %v135 = vsel %vm133, %v123, 2102212464
      %v136 = vsel %vm132, %v120, %v135
      %v137 = vsel %vm131, %v134, %v136
      %v138 = vsel %vm130, %v117, %v120
      %v139 = vsel %vm133, %v126, 920167782
      %v140 = vsel %vm132, %v123, %v139
      %v141 = vsel %vm131, %v138, %v140
      %v142 = vsel %vm130, %v120, %v123
      %v143 = vsel %vm133, %v129, 1326507024
      %v144 = vsel %vm132, %v126, %v143
      %v145 = vsel %vm131, %v142, %v144
      %v146 = vshll.u32 %v106, 8
      %v147 = vand.u32 %v146, 65535
      %v148 = vshrl.u32 %v146, 16
      %v149 = vand.u32 %v145, 65535
      %v150 = vshrl.u32 %v145, 16
      %v151 = vmul.u32 %v147, %v149
      %v152 = vmul.u32 %v147, %v150
      %v153 = vmul.u32 %v148, %v149
      %v154 = vmul.u32 %v148, %v150
      %v155 = vshll.u32 %v152, 16
      %v156 = vshrl.u32 %v152, 16
      %v157 = vshll.u32 %v153, 16
      %v158 = vshrl.u32 %v153, 16
      %vm159 = vc.u32 %v151, %v155
      %v160 = vsel %vm159, 1, 0
      %v161 = vadd.s32 %v151, %v155
      %v162 = vadd.s32 %v154, %v160
      %vm163 = vc.u32 %v161, %v157
      %v164 = vsel %vm163, 1, 0
      %v165 = vadd.s32 %v161, %v157
      %v166 = vadd.s32 %v162, %v164
      %v167 = vadd.s32 %v166, %v156
      %v168 = vadd.s32 %v167, %v158
      %v169 = vand.u32 %v146, 65535
      %v170 = vshrl.u32 %v146, 16
      %v171 = vand.u32 %v141, 65535
      %v172 = vshrl.u32 %v141, 16
      %v173 = vmul.u32 %v169, %v171
      %v174 = vmul.u32 %v169, %v172
      %v175 = vmul.u32 %v170, %v171
      %v176 = vmul.u32 %v170, %v172
      %v177 = vshll.u32 %v174, 16
      %v178 = vshrl.u32 %v174, 16
      %v179 = vshll.u32 %v175, 16
      %v180 = vshrl.u32 %v175, 16
      %vm181 = vc.u32 %v173, %v177
      %v182 = vsel %vm181, 1, 0
      %v183 = vadd.s32 %v173, %v177
      %v184 = vadd.s32 %v176, %v182
      %vm185 = vc.u32 %v183, %v179
      %v186 = vsel %vm185, 1, 0
      %v187 = vadd.s32 %v183, %v179
      %v188 = vadd.s32 %v184, %v186
      %v189 = vadd.s32 %v188, %v178
      %v190 = vadd.s32 %v189, %v180
      %v191 = vmul.u32 %v146, %v137
      %v192 = vadd.s32 %v168, %v187
      %vm193 = vc.u32 %v168, %v187
      %v194 = vadd.s32 %v190, 1
      %v195 = vsel %vm193, %v194, %v190
      %v196 = vadd.s32 %v191, %v195
      %v197 = vadd.s32 %v196, 536870912
      %v198 = vshrl.u32 %v197, 30
      %v199 = vshll.u32 %v198, 30
      %v200 = vsub.s32 %v196, %v199
      %vm201 = vcmp.lt.s32.totalorder %v200, 0
      %v202 = vsub.s32 0, %v200
      %v203 = vsel %vm201, %v202, %v200
      %v204 = vclz %v203
      %v205 = vsub.s32 %v204, 2
      %vm206 = vcmp.gt.s32.totalorder 0, %v205
      %v207 = vsel %vm206, 0, %v205
      %v208 = vsub.s32 32, %v207
      %v209 = vshll.u32 %v200, %v207
      %v210 = vshrl.u32 %v192, %v208
      %v211 = vor.u32 %v209, %v210
      %v212 = vsub.s32 4294967266, %v207
      %v213 = vadd.s32 %v212, 127
      %v214 = vshll.u32 %v213, 23
      %v215 = vor.u32 4788187, %v214
      %v216 = vand.u32 2147483647, %v215
      %v218 = vcvt.s32.f32 %v211
      %v219 = vmul.f32 %v218, %v216
      %v220 = vxor.u32 %v219, 2147483648
      %v221 = vsel %vm100, %v220, %v219
      %v222 = vsub.s32 4, %v198
      %v223 = vsel %vm100, %v222, %v198
      %v224 = vsel %vm99, %v96, %v221
      %v225 = vsel %vm99, 0, %v223
      %v226 = vmul.f32 %v224, %v224
      %v227 = vmul.f32 %v226, -0.001358992
      %v228 = vadd.f32 %v227, 0.041655596
      %v229 = vmul.f32 %v226, %v228
      %v230 = vadd.f32 %v229, -0.4999988
      %v231 = vmul.f32 %v226, %v230
      %v232 = vadd.f32 1.0, %v231
      %v233 = vmul.f32 %v224, %v224
      %v234 = vmul.f32 %v233, -0.00019511016
      %v235 = vadd.f32 %v234, 0.008332121
      %v236 = vmul.f32 %v233, %v235
      %v237 = vadd.f32 %v236, -0.16666654
      %v238 = vmul.f32 %v233, %v237
      %v239 = vadd.f32 %v238, 1.0
      %v240 = vmul.f32 %v239, %v224
      %vm241 = vweird.f32 %v96
      %v242 = vadd.s32 %v225, 3
      %v243 = vand.u32 %v242, 3
      %vm244 = vcmp.lt.s32.totalorder %v243, 2
      %vm245 = vcmp.eq.s32.totalorder %v243, 0
      %v246 = vxor.u32 %v240, 2147483648
      %v247 = vsel %vm245, %v232, %v246
      %vm248 = vcmp.eq.s32.totalorder %v243, 2
      %v249 = vxor.u32 %v232, 2147483648
      %v250 = vsel %vm248, %v249, %v240
      %v251 = vsel %vm244, %v247, %v250
      %v252 = vsel %vm241, nan, %v251
      %v253 = vand.u32 2147483647, %v97
      %vm254 = vcmp.le.f32.partialorder %v253, 0.7853982
      %vm255 = vcmp.lt.s32.totalorder %v97, 0
      %v256 = vand.u32 %v97, 2139095040
      %v257 = vshrl.u32 %v256, 23
      %v258 = vsub.s32 %v257, 127
      %v259 = vand.u32 2147483647, %v97
      %v260 = vand.u32 %v259, 8388607
      %v261 = vor.u32 %v260, 8388608
      %v262 = vsub.s32 0, %v261
      %v263 = vadd.s32 %v258, 1
      %vm264 = vcmp.gt.s32.totalorder %v263, 0
      %v265 = vsel %vm264, %v263, 0
      %v266 = vshrl.u32 %v265, 5
      %v267 = vand.u32 %v265, 31
      %v268 = vsub.s32 32, %v267
      %v269 = vshrl.u32 683565275, %v268
      %v270 = vshll.u32 683565275, %v267
      %v271 = vshrl.u32 2475754826, %v268
      %v272 = vor.u32 %v270, %v271
      %v273 = vshll.u32 2475754826, %v267
      %v274 = vshrl.u32 2131351028, %v268
      %v275 = vor.u32 %v273, %v274
      %v276 = vshll.u32 2131351028, %v267
      %v277 = vshrl.u32 2102212464, %v268
      %v278 = vor.u32 %v276, %v277
      %v279 = vshll.u32 2102212464, %v267
      %v280 = vshrl.u32 920167782, %v268
      %v281 = vor.u32 %v279, %v280
      %v282 = vshll.u32 920167782, %v267
      %v283 = vshrl.u32 1326507024, %v268
      %v284 = vor.u32 %v282, %v283
      %vm285 = vcmp.lt.s32.totalorder %v266, 1
      %vm286 = vcmp.lt.s32.totalorder %v266, 2
      %vm287 = vcmp.lt.s32.totalorder %v266, 3
      %vm288 = vcmp.lt.s32.totalorder %v266, 4
      %v289 = vsel %vm285, %v269, %v272
      %v290 = vsel %vm288, %v278, 2102212464
      %v291 = vsel %vm287, %v275, %v290
      %v292 = vsel %vm286, %v289, %v291
      %v293 = vsel %vm285, %v272, %v275
      %v294 = vsel %vm288, %v281, 920167782
      %v295 = vsel %vm287, %v278, %v294
      %v296 = vsel %vm286, %v293, %v295
      %v297 = vsel %vm285, %v275, %v278
      %v298 = vsel %vm288, %v284, 1326507024
      %v299 = vsel %vm287, %v281, %v298
      %v300 = vsel %vm286, %v297, %v299
      %v301 = vshll.u32 %v261, 8
      %v302 = vand.u32 %v301, 65535
      %v303 = vshrl.u32 %v301, 16
      %v304 = vand.u32 %v300, 65535
      %v305 = vshrl.u32 %v300, 16
      %v306 = vmul.u32 %v302, %v304
      %v307 = vmul.u32 %v302, %v305
      %v308 = vmul.u32 %v303, %v304
      %v309 = vmul.u32 %v303, %v305
      %v310 = vshll.u32 %v307, 16
      %v311 = vshrl.u32 %v307, 16
      %v312 = vshll.u32 %v308, 16
      %v313 = vshrl.u32 %v308, 16
      %vm314 = vc.u32 %v306, %v310
      %v315 = vsel %vm314, 1, 0
      %v316 = vadd.s32 %v306, %v310
      %v317 = vadd.s32 %v309, %v315
      %vm318 = vc.u32 %v316, %v312
      %v319 = vsel %vm318, 1, 0
      %v320 = vadd.s32 %v316, %v312
      %v321 = vadd.s32 %v317, %v319
      %v322 = vadd.s32 %v321, %v311
      %v323 = vadd.s32 %v322, %v313
      %v324 = vand.u32 %v301, 65535
      %v325 = vshrl.u32 %v301, 16
      %v326 = vand.u32 %v296, 65535
      %v327 = vshrl.u32 %v296, 16
      %v328 = vmul.u32 %v324, %v326
      %v329 = vmul.u32 %v324, %v327
      %v330 = vmul.u32 %v325, %v326
      %v331 = vmul.u32 %v325, %v327
      %v332 = vshll.u32 %v329, 16
      %v333 = vshrl.u32 %v329, 16
      %v334 = vshll.u32 %v330, 16
      %v335 = vshrl.u32 %v330, 16
      %vm336 = vc.u32 %v328, %v332
      %v337 = vsel %vm336, 1, 0
      %v338 = vadd.s32 %v328, %v332
      %v339 = vadd.s32 %v331, %v337
      %vm340 = vc.u32 %v338, %v334
      %v341 = vsel %vm340, 1, 0
      %v342 = vadd.s32 %v338, %v334
      %v343 = vadd.s32 %v339, %v341
      %v344 = vadd.s32 %v343, %v333
      %v345 = vadd.s32 %v344, %v335
      %v346 = vmul.u32 %v301, %v292
      %v347 = vadd.s32 %v323, %v342
      %vm348 = vc.u32 %v323, %v342
      %v349 = vadd.s32 %v345, 1
      %v350 = vsel %vm348, %v349, %v345
      %v351 = vadd.s32 %v346, %v350
      %v352 = vadd.s32 %v351, 536870912
      %v353 = vshrl.u32 %v352, 30
      %v354 = vshll.u32 %v353, 30
      %v355 = vsub.s32 %v351, %v354
      %vm356 = vcmp.lt.s32.totalorder %v355, 0
      %v357 = vsub.s32 0, %v355
      %v358 = vsel %vm356, %v357, %v355
      %v359 = vclz %v358
      %v360 = vsub.s32 %v359, 2
      %vm361 = vcmp.gt.s32.totalorder 0, %v360
      %v362 = vsel %vm361, 0, %v360
      %v363 = vsub.s32 32, %v362
      %v364 = vshll.u32 %v355, %v362
      %v365 = vshrl.u32 %v347, %v363
      %v366 = vor.u32 %v364, %v365
      %v367 = vsub.s32 4294967266, %v362
      %v368 = vadd.s32 %v367, 127
      %v369 = vshll.u32 %v368, 23
      %v370 = vor.u32 4788187, %v369
      %v371 = vand.u32 2147483647, %v370
      %v373 = vcvt.s32.f32 %v366
      %v374 = vmul.f32 %v373, %v371
      %v375 = vxor.u32 %v374, 2147483648
      %v376 = vsel %vm255, %v375, %v374
      %v377 = vsub.s32 4, %v353
      %v378 = vsel %vm255, %v377, %v353
      %v379 = vsel %vm254, %v97, %v376
      %v380 = vsel %vm254, 0, %v378
      %v381 = vmul.f32 %v379, %v379
      %v382 = vmul.f32 %v381, -0.001358992
      %v383 = vadd.f32 %v382, 0.041655596
      %v384 = vmul.f32 %v381, %v383
      %v385 = vadd.f32 %v384, -0.4999988
      %v386 = vmul.f32 %v381, %v385
      %v387 = vadd.f32 1.0, %v386
      %v388 = vmul.f32 %v379, %v379
      %v389 = vmul.f32 %v388, -0.00019511016
      %v390 = vadd.f32 %v389, 0.008332121
      %v391 = vmul.f32 %v388, %v390
      %v392 = vadd.f32 %v391, -0.16666654
      %v393 = vmul.f32 %v388, %v392
      %v394 = vadd.f32 %v393, 1.0
      %v395 = vmul.f32 %v394, %v379
      %vm396 = vweird.f32 %v97
      %v397 = vadd.s32 %v380, 3
      %v398 = vand.u32 %v397, 3
      %vm399 = vcmp.lt.s32.totalorder %v398, 2
      %vm400 = vcmp.eq.s32.totalorder %v398, 0
      %v401 = vxor.u32 %v395, 2147483648
      %v402 = vsel %vm400, %v387, %v401
      %vm403 = vcmp.eq.s32.totalorder %v398, 2
      %v404 = vxor.u32 %v387, 2147483648
      %v405 = vsel %vm403, %v404, %v395
      %v406 = vsel %vm399, %v402, %v405
      %v407 = vsel %vm396, nan, %v406
      %408 = vst [vmem:[#allocation8] sm:$0xff] %v252
      %409 = vst [vmem:[#allocation8 + $0x8] sm:$0xff] %v407
    $region29: #{tpu_custom_call.1} parent=1 // pred_fallthru
      _
    // Predicated region
    $region30: #{tpu_custom_call.1} parent=1 // pred_check
      _
    $region31: #{tpu_custom_call.1} parent=1 // pred_check_branch
      %411 = sbr.rel (0) target = $region33
    $region32: #{tpu_custom_call.1} parent=1 // pred_region
      %413 = vsyncadd [#allocation5], 0
      %s414 = sshll.u32 [#allocation8], 4
      %s415 = int_to_ptr.vmem [resolvable:$true] %s414
      %s416 = sshll.u32 %s3, 4
      %s417 = int_to_ptr.hbm [resolvable:$true] %s416
      %422 = dma.vmem_to_hbm [thread:$0]  %s415, 256, %s417, [#allocation5], 128, 128, 8
    $region33: #{tpu_custom_call.1} parent=1 // pred_fallthru
      _
    // Predicated region
    $region34: #{tpu_custom_call.1} parent=1 // pred_check
      _
    $region35: #{tpu_custom_call.1} parent=1 // pred_check_branch
      %424 = sbr.rel (0) target = $region37
    $region36: #{tpu_custom_call.1} parent=1 // pred_region
      %426 = dma.done [#allocation5], 256
    $region37: #{tpu_custom_call.1} parent=1 // pred_fallthru
      _
    %427 = vsyncpa [#allocation4], 1
    %428 = vsyncpa [#allocation7], 1
    %429 = vsyncpa [#allocation5], 1

</llo_original>
